<compile_context>
chip_gen: v7x
topology: tpu7x:2x2x1
jax: 0.10.0
libtpu: 0.0.40
codegen_flags: <defaults>
</compile_context>

<pallas_src>
import jax
import jax.numpy as jnp
from jax import lax
from jax.experimental import pallas as pl
from jax.experimental.pallas import tpu as pltpu


_LN_EPS = 1e-5


# ------------------------------------------------------------------ kernel ---
def dp_kernel(x_ref, m_ref, p_ref, w1_ref, w2_ref, out_ref):
    """x_ref:[B,T,Cin] f32, m_ref:[B,T,1] f32, p_ref:[8,Fc] f32 (packed params),
    w1_ref:[K,Cin,Fc] bf16, w2_ref:[K,Fc,Fc] bf16, out_ref:[B,T] f32 (lane-dense)."""
    B, T, Cin = x_ref.shape
    K = w1_ref.shape[0]
    Fc = w1_ref.shape[-1]
    pad = K // 2                 # PyTorch Conv1d(padding=kernel_size//2), odd K only

    mask3 = m_ref[...]                              # [B, T, 1]
    mask_col = mask3.reshape(B * T, 1)              # leading-dim merge, no relayout

    # packed per-channel params: one load, sublane slices
    p = p_ref[...]                                  # [8, Fc]
    b1, g1, be1 = p[0:1, :], p[1:2, :], p[2:3, :]
    b2, g2, be2 = p[3:4, :], p[4:5, :], p[5:6, :]
    wp = p[6:7, :]
    bp_term = p[7:8, :] * (1.0 / float(Fc))         # bp spread over lanes (summed back below)

    def conv1d_same(v3, w_ref, b_row):
        # v3: [B, T, C] f32 (already masked); w_ref: [K, C, F] bf16. Returns [B*T, F] f32.
        # K accumulating per-tap dots on sublane-shifted views of the once-padded
        # input; bf16 MXU operands, f32 accumulation.  (Fc=32 / K*C=24..96 leaves
        # the MXU lanes mostly idle at these toy sizes -- see TODO above.)
        C = v3.shape[-1]
        F = w_ref.shape[-1]
        z = jnp.zeros((B, pad, C), v3.dtype)
        vp = jnp.concatenate([z, v3, z], axis=1)    # [B, T+2*pad, C], pad once per conv
        acc = jnp.zeros((B * T, F), jnp.float32)
        for k in range(K):                          # static unrolled tap loop
            tap = vp[:, k:k + T, :].reshape(B * T, C).astype(jnp.bfloat16)
            acc = acc + jnp.dot(tap, w_ref[k], preferred_element_type=jnp.float32)
        return acc + b_row

    def layer_norm(h, g_row, b_row):
        # channel-wise LayerNorm per time step (modules.LayerNorm), f32
        mu = jnp.mean(h, axis=-1, keepdims=True)
        xc = h - mu
        var = jnp.mean(xc * xc, axis=-1, keepdims=True)
        return xc * lax.rsqrt(var + _LN_EPS) * g_row + b_row

    # conv_1 -> relu -> LayerNorm   (nn.Dropout is identity at inference)
    h = conv1d_same(x_ref[...] * mask3, w1_ref, b1)            # [B*T, Fc]
    h = jnp.maximum(h, 0.0)
    h = layer_norm(h, g1, be1)

    # conv_2 -> relu -> LayerNorm
    h = conv1d_same((h * mask_col).reshape(B, T, Fc), w2_ref, b2)
    h = jnp.maximum(h, 0.0)
    h = layer_norm(h, g2, be2)

    # proj: Conv1d(Fc, 1, kernel=1) on (h * mask), then final * mask.
    # Folded into a single lane reduction so the store is a lane-dense [B, T]:
    #   mask * (sum_f(h*mask*wp) + bp) == sum_f( mask * (h*mask*wp + bp/Fc) )
    hm = h.reshape(B, T, Fc) * mask3                            # proj input masking
    out_ref[...] = jnp.sum(mask3 * (hm * wp + bp_term), axis=-1)   # [B, T]


# ----------------------------------------------------------------- wrapper ---
def duration_predictor(x, x_mask, params, g=None):
    """x: [B, T, Cin] (NTC), x_mask: [B, T, 1]. Returns [B, 1, T] (PyTorch NCT layout)."""
    if g is not None:
        # TODO(synk): gin_channels conditioning (x + cond(g)) not implemented; module default gin_channels=0.
        raise NotImplementedError("gin conditioning not implemented")

    B, T, Cin = x.shape
    K, _, Fc = params["w1"].shape
    # 'same' path only matches PyTorch Conv1d(padding=kernel_size//2) for odd K.
    assert K % 2 == 1, "kernel_size must be odd"
    # NOTE: real PyTorch weights (Cout, Cin, K) must be PERMUTED (not reshaped)
    # to (K, Cin, Cout) before use; make_params builds them tap-major directly.
    w1 = params["w1"].astype(jnp.bfloat16)          # (K, Cin, Fc)  MXU operands in bf16
    w2 = params["w2"].astype(jnp.bfloat16)          # (K, Fc,  Fc)

    # Pack the 8 tiny per-channel vectors into one (8, Fc) array: one DMA, one tile.
    packed = jnp.concatenate(
        [params["b1"].reshape(1, Fc), params["g1"].reshape(1, Fc), params["be1"].reshape(1, Fc),
         params["b2"].reshape(1, Fc), params["g2"].reshape(1, Fc), params["be2"].reshape(1, Fc),
         params["wp"].reshape(1, Fc),
         jnp.full((1, Fc), params["bp"].reshape(()))],
        axis=0).astype(jnp.float32)                 # (8, Fc)

    flops = int(2 * B * T * K * (Cin + Fc) * Fc + 2 * B * T * Fc)
    bytes_accessed = int((x.size + x_mask.size + packed.size + B * T) * 4
                         + (w1.size + w2.size) * 2)
    cost = pl.CostEstimate(flops=flops, transcendentals=int(2 * B * T),
                           bytes_accessed=bytes_accessed)

    vmem = lambda: pl.BlockSpec(memory_space=pltpu.MemorySpace.VMEM)
    out_bt = pl.pallas_call(
        dp_kernel,
        out_shape=jax.ShapeDtypeStruct((B, T), jnp.float32),   # lane-dense output slab
        in_specs=[vmem(), vmem(), vmem(), vmem(), vmem()],
        out_specs=vmem(),
        cost_estimate=cost,
        compiler_params=pltpu.CompilerParams(vmem_limit_bytes=32 * 1024 * 1024),
    )(x, x_mask, packed, w1, w2)

    return out_bt[:, None, :]                       # [B, 1, T] like PyTorch proj output


# ---------------------------------------------------------------- reference --
def ref_forward(x, x_mask, p):
    """Pure-JAX reference in NTC; returns [B, T, 1]."""
    def conv(v, w, b):
        return lax.conv_general_dilated(
            v, w, window_strides=(1,), padding="SAME",
            dimension_numbers=("NWC", "WIO", "NWC"),
            precision=lax.Precision.HIGHEST) + b

    def ln(h, g, b):
        mu = jnp.mean(h, axis=-1, keepdims=True)
        var = jnp.mean(jnp.square(h - mu), axis=-1, keepdims=True)
        return (h - mu) / jnp.sqrt(var + _LN_EPS) * g + b

    h = conv(x * x_mask, p["w1"], p["b1"])
    h = jnp.maximum(h, 0.0)
    h = ln(h, p["g1"], p["be1"])
    h = conv(h * x_mask, p["w2"], p["b2"])
    h = jnp.maximum(h, 0.0)
    h = ln(h, p["g2"], p["be2"])
    logits = jnp.sum((h * x_mask) * p["wp"], axis=-1, keepdims=True) + p["bp"]
    return logits * x_mask


# -------------------------------------------------------------------- main ---
def make_params(key, in_channels, filter_channels, kernel_size):
    Fc = filter_channels
    ks = jax.random.split(key, 10)
    s = 0.1
    nrm = lambda k, shp: (s * jax.random.normal(k, shp)).astype(jnp.float32)
    return dict(
        w1=nrm(ks[0], (kernel_size, in_channels, Fc)),  b1=nrm(ks[1], (1, Fc)),
        g1=(1.0 + nrm(ks[2], (1, Fc))),                 be1=nrm(ks[3], (1, Fc)),
        w2=nrm(ks[4], (kernel_size, Fc, Fc)),           b2=nrm(ks[5], (1, Fc)),
        g2=(1.0 + nrm(ks[6], (1, Fc))),                 be2=nrm(ks[7], (1, Fc)),
        wp=nrm(ks[8], (1, Fc)),                         bp=nrm(ks[9], (1, 1)),
    )
    # NOTE: nn.Dropout(p_dropout) is identity in eval/inference and torch.detach
    # is a no-op on forward values, so neither appears in the kernel.


if __name__ == "__main__":
    B, T = 2, 16
    in_channels, filter_channels, kernel_size = 8, 32, 3   # odd kernel_size ('same' padding)

    key = jax.random.PRNGKey(0)
    kx, kp = jax.random.split(key, 2)

    x = jax.random.normal(kx, (B, T, in_channels), jnp.float32)          # NTC
    lengths = jnp.array([T, T - 4])
    t_idx = jnp.arange(T)[None, :, None]
    x_mask = (t_idx < lengths[:, None, None]).astype(jnp.float32)        # [B, T, 1]
    params = make_params(kp, in_channels, filter_channels, kernel_size)

    out = duration_predictor(x, x_mask, params)                          # [B, 1, T]
    jax.block_until_ready(out)

    ref = ref_forward(x, x_mask, params)                                 # [B, T, 1]
    assert out.shape == (B, 1, T)
    err = float(jnp.max(jnp.abs(out[:, 0, :] - ref[:, :, 0])))
    # bf16 MXU operands (f32 accumulation) vs HIGHEST-precision f32 XLA reference,
    # through two conv+LayerNorm stages -> a few-percent absolute tolerance.
    assert err < 5e-2, f"max abs err {err}"

    print("KERNEL_OK")
</pallas_src>

<mosaic_0001>
module attributes {stable_mosaic.version = 11 : i64} {
  func.func @dp_kernel(%arg0: memref<2x16x8xf32, #tpu.memory_space<vmem>>, %arg1: memref<2x16x1xf32, #tpu.memory_space<vmem>>, %arg2: memref<8x32xf32, #tpu.memory_space<vmem>>, %arg3: memref<3x8x32xbf16, #tpu.memory_space<vmem>>, %arg4: memref<3x32x32xbf16, #tpu.memory_space<vmem>>, %arg5: memref<2x16xf32, #tpu.memory_space<vmem>>) attributes {dimension_semantics = [], scalar_prefetch = 0 : i64, scratch_operands = 0 : i64, tpu.core_type = #tpu.core_type<tc>} {
    %c0 = arith.constant 0 : index
    %c0_0 = arith.constant 0 : index
    %c0_1 = arith.constant 0 : index
    %0 = vector.load %arg1[%c0, %c0_0, %c0_1] : memref<2x16x1xf32, #tpu.memory_space<vmem>>, vector<2x16x1xf32>
    %1 = vector.shape_cast %0 : vector<2x16x1xf32> to vector<32x1xf32>
    %c0_2 = arith.constant 0 : index
    %c0_3 = arith.constant 0 : index
    %2 = vector.load %arg2[%c0_2, %c0_3] : memref<8x32xf32, #tpu.memory_space<vmem>>, vector<8x32xf32>
    %3 = vector.extract_strided_slice %2 {offsets = [0, 0], sizes = [1, 32], strides = [1, 1]} : vector<8x32xf32> to vector<1x32xf32>
    %4 = vector.extract_strided_slice %2 {offsets = [1, 0], sizes = [1, 32], strides = [1, 1]} : vector<8x32xf32> to vector<1x32xf32>
    %5 = vector.extract_strided_slice %2 {offsets = [2, 0], sizes = [1, 32], strides = [1, 1]} : vector<8x32xf32> to vector<1x32xf32>
    %6 = vector.extract_strided_slice %2 {offsets = [3, 0], sizes = [1, 32], strides = [1, 1]} : vector<8x32xf32> to vector<1x32xf32>
    %7 = vector.extract_strided_slice %2 {offsets = [4, 0], sizes = [1, 32], strides = [1, 1]} : vector<8x32xf32> to vector<1x32xf32>
    %8 = vector.extract_strided_slice %2 {offsets = [5, 0], sizes = [1, 32], strides = [1, 1]} : vector<8x32xf32> to vector<1x32xf32>
    %9 = vector.extract_strided_slice %2 {offsets = [6, 0], sizes = [1, 32], strides = [1, 1]} : vector<8x32xf32> to vector<1x32xf32>
    %10 = vector.extract_strided_slice %2 {offsets = [7, 0], sizes = [1, 32], strides = [1, 1]} : vector<8x32xf32> to vector<1x32xf32>
    %cst = arith.constant 3.125000e-02 : f32
    %11 = vector.broadcast %cst : f32 to vector<1x32xf32>
    %12 = arith.mulf %10, %11 : vector<1x32xf32>
    %c0_4 = arith.constant 0 : index
    %c0_5 = arith.constant 0 : index
    %c0_6 = arith.constant 0 : index
    %13 = vector.load %arg0[%c0_4, %c0_5, %c0_6] : memref<2x16x8xf32, #tpu.memory_space<vmem>>, vector<2x16x8xf32>
    %14 = vector.broadcast %0 : vector<2x16x1xf32> to vector<2x16x8xf32>
    %15 = arith.mulf %13, %14 : vector<2x16x8xf32>
    %cst_7 = arith.constant 0.000000e+00 : f32
    %16 = vector.broadcast %cst_7 : f32 to vector<2x1x8xf32>
    %17 = tpu.concatenate %16, %15, %16 in 1 : vector<2x1x8xf32>, vector<2x16x8xf32>, vector<2x1x8xf32> -> vector<2x18x8xf32>
    %cst_8 = arith.constant 0.000000e+00 : f32
    %18 = vector.broadcast %cst_8 : f32 to vector<32x32xf32>
    %19 = vector.extract_strided_slice %17 {offsets = [0, 0, 0], sizes = [2, 16, 8], strides = [1, 1, 1]} : vector<2x18x8xf32> to vector<2x16x8xf32>
    %20 = vector.shape_cast %19 : vector<2x16x8xf32> to vector<32x8xf32>
    %21 = arith.truncf %20 : vector<32x8xf32> to vector<32x8xbf16>
    %c0_9 = arith.constant 0 : index
    %c0_10 = arith.constant 0 : index
    %c0_11 = arith.constant 0 : index
    %22 = vector.load %arg3[%c0_9, %c0_10, %c0_11] : memref<3x8x32xbf16, #tpu.memory_space<vmem>>, vector<1x8x32xbf16>
    %23 = vector.shape_cast %22 : vector<1x8x32xbf16> to vector<8x32xbf16>
    %cst_12 = arith.constant dense<0.000000e+00> : vector<32x32xf32>
    %24 = tpu.matmul %21, %23, %cst_12 {dimension_numbers = #tpu.dot_dimension_numbers<[1], [0], [0], [1], [0, 0, 1, 1], [], []>} : vector<32x8xbf16>, vector<8x32xbf16>, vector<32x32xf32> -> vector<32x32xf32>
    %25 = arith.addf %18, %24 : vector<32x32xf32>
    %26 = vector.extract_strided_slice %17 {offsets = [0, 1, 0], sizes = [2, 16, 8], strides = [1, 1, 1]} : vector<2x18x8xf32> to vector<2x16x8xf32>
    %27 = vector.shape_cast %26 : vector<2x16x8xf32> to vector<32x8xf32>
    %28 = arith.truncf %27 : vector<32x8xf32> to vector<32x8xbf16>
    %c1 = arith.constant 1 : index
    %c0_13 = arith.constant 0 : index
    %c0_14 = arith.constant 0 : index
    %29 = vector.load %arg3[%c1, %c0_13, %c0_14] : memref<3x8x32xbf16, #tpu.memory_space<vmem>>, vector<1x8x32xbf16>
    %30 = vector.shape_cast %29 : vector<1x8x32xbf16> to vector<8x32xbf16>
    %cst_15 = arith.constant dense<0.000000e+00> : vector<32x32xf32>
    %31 = tpu.matmul %28, %30, %cst_15 {dimension_numbers = #tpu.dot_dimension_numbers<[1], [0], [0], [1], [0, 0, 1, 1], [], []>} : vector<32x8xbf16>, vector<8x32xbf16>, vector<32x32xf32> -> vector<32x32xf32>
    %32 = arith.addf %25, %31 : vector<32x32xf32>
    %33 = vector.extract_strided_slice %17 {offsets = [0, 2, 0], sizes = [2, 16, 8], strides = [1, 1, 1]} : vector<2x18x8xf32> to vector<2x16x8xf32>
    %34 = vector.shape_cast %33 : vector<2x16x8xf32> to vector<32x8xf32>
    %35 = arith.truncf %34 : vector<32x8xf32> to vector<32x8xbf16>
    %c2 = arith.constant 2 : index
    %c0_16 = arith.constant 0 : index
    %c0_17 = arith.constant 0 : index
    %36 = vector.load %arg3[%c2, %c0_16, %c0_17] : memref<3x8x32xbf16, #tpu.memory_space<vmem>>, vector<1x8x32xbf16>
    %37 = vector.shape_cast %36 : vector<1x8x32xbf16> to vector<8x32xbf16>
    %cst_18 = arith.constant dense<0.000000e+00> : vector<32x32xf32>
    %38 = tpu.matmul %35, %37, %cst_18 {dimension_numbers = #tpu.dot_dimension_numbers<[1], [0], [0], [1], [0, 0, 1, 1], [], []>} : vector<32x8xbf16>, vector<8x32xbf16>, vector<32x32xf32> -> vector<32x32xf32>
    %39 = arith.addf %32, %38 : vector<32x32xf32>
    %40 = vector.broadcast %3 : vector<1x32xf32> to vector<32x32xf32>
    %41 = arith.addf %39, %40 : vector<32x32xf32>
    %cst_19 = arith.constant 0.000000e+00 : f32
    %42 = vector.broadcast %cst_19 : f32 to vector<32x32xf32>
    %43 = arith.maximumf %41, %42 : vector<32x32xf32>
    %cst_20 = arith.constant dense<0.000000e+00> : vector<32xf32>
    %44 = vector.multi_reduction <add>, %43, %cst_20 [1] : vector<32x32xf32> to vector<32xf32>
    %45 = vector.shape_cast %44 : vector<32xf32> to vector<32x1xf32>
    %cst_21 = arith.constant 3.200000e+01 : f32
    %46 = vector.broadcast %cst_21 : f32 to vector<32x1xf32>
    %47 = arith.divf %45, %46 : vector<32x1xf32>
    %48 = vector.broadcast %47 : vector<32x1xf32> to vector<32x32xf32>
    %49 = arith.subf %43, %48 : vector<32x32xf32>
    %50 = arith.mulf %49, %49 : vector<32x32xf32>
    %cst_22 = arith.constant dense<0.000000e+00> : vector<32xf32>
    %51 = vector.multi_reduction <add>, %50, %cst_22 [1] : vector<32x32xf32> to vector<32xf32>
    %52 = vector.shape_cast %51 : vector<32xf32> to vector<32x1xf32>
    %cst_23 = arith.constant 3.200000e+01 : f32
    %53 = vector.broadcast %cst_23 : f32 to vector<32x1xf32>
    %54 = arith.divf %52, %53 : vector<32x1xf32>
    %cst_24 = arith.constant 9.99999974E-6 : f32
    %55 = vector.broadcast %cst_24 : f32 to vector<32x1xf32>
    %56 = arith.addf %54, %55 : vector<32x1xf32>
    %57 = math.rsqrt %56 : vector<32x1xf32>
    %58 = vector.broadcast %57 : vector<32x1xf32> to vector<32x32xf32>
    %59 = arith.mulf %49, %58 : vector<32x32xf32>
    %60 = vector.broadcast %4 : vector<1x32xf32> to vector<32x32xf32>
    %61 = arith.mulf %59, %60 : vector<32x32xf32>
    %62 = vector.broadcast %5 : vector<1x32xf32> to vector<32x32xf32>
    %63 = arith.addf %61, %62 : vector<32x32xf32>
    %64 = vector.broadcast %1 : vector<32x1xf32> to vector<32x32xf32>
    %65 = arith.mulf %63, %64 : vector<32x32xf32>
    %66 = vector.shape_cast %65 : vector<32x32xf32> to vector<2x16x32xf32>
    %cst_25 = arith.constant 0.000000e+00 : f32
    %67 = vector.broadcast %cst_25 : f32 to vector<2x1x32xf32>
    %68 = tpu.concatenate %67, %66, %67 in 1 : vector<2x1x32xf32>, vector<2x16x32xf32>, vector<2x1x32xf32> -> vector<2x18x32xf32>
    %cst_26 = arith.constant 0.000000e+00 : f32
    %69 = vector.broadcast %cst_26 : f32 to vector<32x32xf32>
    %70 = vector.extract_strided_slice %68 {offsets = [0, 0, 0], sizes = [2, 16, 32], strides = [1, 1, 1]} : vector<2x18x32xf32> to vector<2x16x32xf32>
    %71 = vector.shape_cast %70 : vector<2x16x32xf32> to vector<32x32xf32>
    %72 = arith.truncf %71 : vector<32x32xf32> to vector<32x32xbf16>
    %c0_27 = arith.constant 0 : index
    %c0_28 = arith.constant 0 : index
    %c0_29 = arith.constant 0 : index
    %73 = vector.load %arg4[%c0_27, %c0_28, %c0_29] : memref<3x32x32xbf16, #tpu.memory_space<vmem>>, vector<1x32x32xbf16>
    %74 = vector.shape_cast %73 : vector<1x32x32xbf16> to vector<32x32xbf16>
    %cst_30 = arith.constant dense<0.000000e+00> : vector<32x32xf32>
    %75 = tpu.matmul %72, %74, %cst_30 {dimension_numbers = #tpu.dot_dimension_numbers<[1], [0], [0], [1], [0, 0, 1, 1], [], []>} : vector<32x32xbf16>, vector<32x32xbf16>, vector<32x32xf32> -> vector<32x32xf32>
    %76 = arith.addf %69, %75 : vector<32x32xf32>
    %77 = vector.extract_strided_slice %68 {offsets = [0, 1, 0], sizes = [2, 16, 32], strides = [1, 1, 1]} : vector<2x18x32xf32> to vector<2x16x32xf32>
    %78 = vector.shape_cast %77 : vector<2x16x32xf32> to vector<32x32xf32>
    %79 = arith.truncf %78 : vector<32x32xf32> to vector<32x32xbf16>
    %c1_31 = arith.constant 1 : index
    %c0_32 = arith.constant 0 : index
    %c0_33 = arith.constant 0 : index
    %80 = vector.load %arg4[%c1_31, %c0_32, %c0_33] : memref<3x32x32xbf16, #tpu.memory_space<vmem>>, vector<1x32x32xbf16>
    %81 = vector.shape_cast %80 : vector<1x32x32xbf16> to vector<32x32xbf16>
    %cst_34 = arith.constant dense<0.000000e+00> : vector<32x32xf32>
    %82 = tpu.matmul %79, %81, %cst_34 {dimension_numbers = #tpu.dot_dimension_numbers<[1], [0], [0], [1], [0, 0, 1, 1], [], []>} : vector<32x32xbf16>, vector<32x32xbf16>, vector<32x32xf32> -> vector<32x32xf32>
    %83 = arith.addf %76, %82 : vector<32x32xf32>
    %84 = vector.extract_strided_slice %68 {offsets = [0, 2, 0], sizes = [2, 16, 32], strides = [1, 1, 1]} : vector<2x18x32xf32> to vector<2x16x32xf32>
    %85 = vector.shape_cast %84 : vector<2x16x32xf32> to vector<32x32xf32>
    %86 = arith.truncf %85 : vector<32x32xf32> to vector<32x32xbf16>
    %c2_35 = arith.constant 2 : index
    %c0_36 = arith.constant 0 : index
    %c0_37 = arith.constant 0 : index
    %87 = vector.load %arg4[%c2_35, %c0_36, %c0_37] : memref<3x32x32xbf16, #tpu.memory_space<vmem>>, vector<1x32x32xbf16>
    %88 = vector.shape_cast %87 : vector<1x32x32xbf16> to vector<32x32xbf16>
    %cst_38 = arith.constant dense<0.000000e+00> : vector<32x32xf32>
    %89 = tpu.matmul %86, %88, %cst_38 {dimension_numbers = #tpu.dot_dimension_numbers<[1], [0], [0], [1], [0, 0, 1, 1], [], []>} : vector<32x32xbf16>, vector<32x32xbf16>, vector<32x32xf32> -> vector<32x32xf32>
    %90 = arith.addf %83, %89 : vector<32x32xf32>
    %91 = vector.broadcast %6 : vector<1x32xf32> to vector<32x32xf32>
    %92 = arith.addf %90, %91 : vector<32x32xf32>
    %cst_39 = arith.constant 0.000000e+00 : f32
    %93 = vector.broadcast %cst_39 : f32 to vector<32x32xf32>
    %94 = arith.maximumf %92, %93 : vector<32x32xf32>
    %cst_40 = arith.constant dense<0.000000e+00> : vector<32xf32>
    %95 = vector.multi_reduction <add>, %94, %cst_40 [1] : vector<32x32xf32> to vector<32xf32>
    %96 = vector.shape_cast %95 : vector<32xf32> to vector<32x1xf32>
    %cst_41 = arith.constant 3.200000e+01 : f32
    %97 = vector.broadcast %cst_41 : f32 to vector<32x1xf32>
    %98 = arith.divf %96, %97 : vector<32x1xf32>
    %99 = vector.broadcast %98 : vector<32x1xf32> to vector<32x32xf32>
    %100 = arith.subf %94, %99 : vector<32x32xf32>
    %101 = arith.mulf %100, %100 : vector<32x32xf32>
    %cst_42 = arith.constant dense<0.000000e+00> : vector<32xf32>
    %102 = vector.multi_reduction <add>, %101, %cst_42 [1] : vector<32x32xf32> to vector<32xf32>
    %103 = vector.shape_cast %102 : vector<32xf32> to vector<32x1xf32>
    %cst_43 = arith.constant 3.200000e+01 : f32
    %104 = vector.broadcast %cst_43 : f32 to vector<32x1xf32>
    %105 = arith.divf %103, %104 : vector<32x1xf32>
    %cst_44 = arith.constant 9.99999974E-6 : f32
    %106 = vector.broadcast %cst_44 : f32 to vector<32x1xf32>
    %107 = arith.addf %105, %106 : vector<32x1xf32>
    %108 = math.rsqrt %107 : vector<32x1xf32>
    %109 = vector.broadcast %108 : vector<32x1xf32> to vector<32x32xf32>
    %110 = arith.mulf %100, %109 : vector<32x32xf32>
    %111 = vector.broadcast %7 : vector<1x32xf32> to vector<32x32xf32>
    %112 = arith.mulf %110, %111 : vector<32x32xf32>
    %113 = vector.broadcast %8 : vector<1x32xf32> to vector<32x32xf32>
    %114 = arith.addf %112, %113 : vector<32x32xf32>
    %115 = vector.shape_cast %114 : vector<32x32xf32> to vector<2x16x32xf32>
    %116 = vector.broadcast %0 : vector<2x16x1xf32> to vector<2x16x32xf32>
    %117 = arith.mulf %115, %116 : vector<2x16x32xf32>
    %118 = vector.shape_cast %9 : vector<1x32xf32> to vector<1x1x32xf32>
    %119 = vector.broadcast %118 : vector<1x1x32xf32> to vector<2x16x32xf32>
    %120 = arith.mulf %117, %119 : vector<2x16x32xf32>
    %121 = vector.shape_cast %12 : vector<1x32xf32> to vector<1x1x32xf32>
    %122 = vector.broadcast %121 : vector<1x1x32xf32> to vector<2x16x32xf32>
    %123 = arith.addf %120, %122 : vector<2x16x32xf32>
    %124 = vector.broadcast %0 : vector<2x16x1xf32> to vector<2x16x32xf32>
    %125 = arith.mulf %124, %123 : vector<2x16x32xf32>
    %cst_45 = arith.constant dense<0.000000e+00> : vector<2x16xf32>
    %126 = vector.multi_reduction <add>, %125, %cst_45 [2] : vector<2x16x32xf32> to vector<2x16xf32>
    %c0_46 = arith.constant 0 : index
    %c0_47 = arith.constant 0 : index
    %127 = vector.load %arg5[%c0_46, %c0_47] : memref<2x16xf32, #tpu.memory_space<vmem>>, vector<2x16xf32>
    tpu.vector_store %arg5[%c0_46, %c0_47], %126 {strides = array<i32>} : memref<2x16xf32, #tpu.memory_space<vmem>>, vector<2x16xf32>,
    return
  }
}

</mosaic_0001>

<llo_original>
// kernel: tpu_custom_call.1
$region0: #{tpu_custom_call.1}
  #allocation0 [shape = 'u32[]', space=smem, size = 0x4, offset = 0x4, fixed_abs, tag = 'smem constant byte address 0x4 - core index']
  #allocation1 [shape = 'u32[144,128]{1,0:T(1,128)}', space=vmem, size = 0x12000, scoped, tag = 'internal scratch']
  %s0 = inlined_call_operand.vmem [shape: f32[2,16,8], index: 0, kind: input, shape index: {}]
  %s1 = inlined_call_operand.vmem [shape: f32[2,16,1], index: 1, kind: input, shape index: {}]
  %s2 = inlined_call_operand.vmem [shape: f32[8,32], index: 2, kind: input, shape index: {}]
  %s3 = inlined_call_operand.vmem [shape: bf16[3,8,32], index: 3, kind: input, shape index: {}]
  %s4 = inlined_call_operand.vmem [shape: bf16[3,32,32], index: 4, kind: input, shape index: {}]
  %s5 = inlined_call_operand.hbm [shape: f32[2,16], index: 5, kind: output, shape index: {}]
  %s6 = sld [smem:[#allocation0]]
  $region30: #{tpu_custom_call.1} parent=0
    _
  %s8 = ssub.s32 1, %s6
  %s9 = scalar_select 0, %s8, %s6
  $region1: #{tpu_custom_call.1} parent=0
    #allocation2 [shape = 'u8[1024]{0}', space=vmem, size = 0x400, scoped, tag = 'output window, operand 0, single buffered']
    #allocation3 [shape = 's32[1]{0}', space=sflag, size = 0x4, scoped, tag = 'scoped memory for tpu_custom_call.1']
    %10 = vsyncpa [#allocation3], 0
    // Predicated region
    $region2: #{tpu_custom_call.1} parent=1 // pred_check
      _
    $region3: #{tpu_custom_call.1} parent=1 // pred_check_branch
      %12 = sbr.rel (0) target = $region5
    $region4: #{tpu_custom_call.1} parent=1 // pred_region
      _
    $region5: #{tpu_custom_call.1} parent=1 // pred_fallthru
      _
    // Predicated region
    $region6: #{tpu_custom_call.1} parent=1 // pred_check
      _
    $region7: #{tpu_custom_call.1} parent=1 // pred_check_branch
      %14 = sbr.rel (0) target = $region9
    $region8: #{tpu_custom_call.1} parent=1 // pred_region
      _
    $region9: #{tpu_custom_call.1} parent=1 // pred_fallthru
      _
    // Predicated region
    $region10: #{tpu_custom_call.1} parent=1 // pred_check
      _
    $region11: #{tpu_custom_call.1} parent=1 // pred_check_branch
      %16 = sbr.rel (0) target = $region13
    $region12: #{tpu_custom_call.1} parent=1 // pred_region
      _
    $region13: #{tpu_custom_call.1} parent=1 // pred_fallthru
      _
    // Predicated region
    $region14: #{tpu_custom_call.1} parent=1 // pred_check
      _
    $region15: #{tpu_custom_call.1} parent=1 // pred_check_branch
      %18 = sbr.rel (0) target = $region17
    $region16: #{tpu_custom_call.1} parent=1 // pred_region
      _
    $region17: #{tpu_custom_call.1} parent=1 // pred_fallthru
      _
    // Predicated region
    $region18: #{tpu_custom_call.1} parent=1 // pred_check
      _
    $region19: #{tpu_custom_call.1} parent=1 // pred_check_branch
      %20 = sbr.rel (0) target = $region21
    $region20: #{tpu_custom_call.1} parent=1 // pred_region
      _
    $region21: #{tpu_custom_call.1} parent=1 // pred_fallthru
      _
    %v22 = vld [vmem:[%s1] sm:$0xff]
    %v23 = vld [vmem:[%s1 + $0x8] sm:$0xff]
    %v24 = vld [vmem:[%s1 + $0x10] sm:$0xff]
    %v25 = vld [vmem:[%s1 + $0x18] sm:$0xff]
    %v26 = vld [vmem:[%s2] sm:$0xff]
    %v27 = vmul.f32 %v26, 0.03125
    %v28 = vld [vmem:[%s0] sm:$0xff]
    %v29 = vld [vmem:[%s0 + $0x8] sm:$0xff]
    %v30 = vld [vmem:[%s0 + $0x10] sm:$0xff]
    %v31 = vld [vmem:[%s0 + $0x18] sm:$0xff]
    %33 = vset.pattern.permute.xlu0 0
    %34 = vperm.xlu0 %33, %v22
    %v35 = vpop.permute.xlu0 %34
    %38 = vset.pattern.permute.xlu0 0
    %39 = vperm.xlu0 %38, %v23
    %v40 = vpop.permute.xlu0 %39
    %43 = vset.pattern.permute.xlu0 0
    %44 = vperm.xlu0 %43, %v24
    %v45 = vpop.permute.xlu0 %44
    %48 = vset.pattern.permute.xlu0 0
    %49 = vperm.xlu0 %48, %v25
    %v50 = vpop.permute.xlu0 %49
    %v52 = vmul.f32 %v28, %v35
    %v53 = vmul.f32 %v29, %v40
    %v54 = vmul.f32 %v30, %v45
    %v55 = vmul.f32 %v31, %v50
    %vm60 = vcmask 1040384
    %v61 = vrot.slane %v52, 7
    %v62 = vrot.slane %v53, 7
    %v63 = vsel %vm60, %v61, %v62
    %v64 = vrot.slane %v54, 7
    %v65 = vrot.slane %v55, 7
    %v66 = vsel %vm60, %v64, %v65
    %v73 = vsel %vm60, 0.0, %v61
    %v74 = vsel %vm60, 0.0, %v64
    %v75 = vsel %vm60, %v62, 0.0
    %v76 = vsel %vm60, %v65, 0.0
    %v77 = vpack.c.bf16 %v63, %v73
    %v78 = vpack.c.bf16 %v66, %v74
    %v79 = vld [vmem:[%s3] sm:$0xf]
    %vm84 = vcmask 1046528
    %v85 = vrot.slane %v73, 1
    %v86 = vrot.slane %v63, 1
    %v87 = vsel %vm84, %v85, %v86
    %v88 = vrot.slane %v75, 1
    %v89 = vsel %vm84, %v86, %v88
    %v90 = vrot.slane %v74, 1
    %v91 = vrot.slane %v66, 1
    %v92 = vsel %vm84, %v90, %v91
    %v93 = vrot.slane %v76, 1
    %v94 = vsel %vm84, %v91, %v93
    %v99 = vpack.c.bf16 %v89, %v87
    %v100 = vpack.c.bf16 %v94, %v92
    %s101 = scalar_lea.vmem %s3, 4
    %v102 = vld [vmem:[%s101] sm:$0xf]
    %vm103 = vcmask 64512
    %v105 = vsel %vm103, %v99, 0
    %v108 = vsel %vm103, %v100, 0
    %vm110 = vcmask 1043456
    %v112 = vsel %vm110, %v102, 0
    %114 = vmatprep.subr.bf16.mxu0 0
    %115 = vmatpush1.bf16.msra.mxu0 %v112
    %116 = vmatprep.subr.bf16.mxu0 0
    %117 = vmatpush1.bf16.msra.mxu0 0
    %118 = vmatprep.subr.bf16.mxu0 0
    %119 = vmatpush1.bf16.msra.mxu0 0
    %120 = vmatprep.subr.bf16.mxu0 0
    %121 = vmatpush1.bf16.msra.mxu0 0
    %122 = vmatprep.subr.bf16.mxu0 0
    %123 = vmatpush1.bf16.msra.mxu0 0
    %124 = vmatprep.subr.bf16.mxu0 0
    %125 = vmatpush1.bf16.msra.mxu0 0
    %126 = vmatprep.subr.bf16.mxu0 0
    %127 = vmatpush1.bf16.msra.mxu0 0
    %128 = vmatprep.subr.bf16.mxu0 0
    %129 = vmatpush1.bf16.msra.mxu0 0
    %130 = vmatprep.subr.bf16.mxu0 0
    %131 = vmatpush1.bf16.msra.mxu0 0
    %132 = vmatprep.subr.bf16.mxu0 0
    %133 = vmatpush1.bf16.msra.mxu0 0
    %134 = vmatprep.subr.bf16.mxu0 0
    %135 = vmatpush1.bf16.msra.mxu0 0
    %136 = vmatprep.subr.bf16.mxu0 0
    %137 = vmatpush1.bf16.msra.mxu0 0
    %138 = vmatprep.subr.bf16.mxu0 0
    %139 = vmatpush1.bf16.msra.mxu0 0
    %140 = vmatprep.subr.bf16.mxu0 0
    %141 = vmatpush1.bf16.msra.mxu0 0
    %142 = vmatprep.subr.bf16.mxu0 0
    %143 = vmatpush1.bf16.msra.mxu0 0
    %144 = vmatprep.subr.bf16.mxu0 0
    %145 = vmatpush1.bf16.msra.mxu0 0
    %146 = vmatprep.mubr.bf16.mxu0 0
    %147 = vmatmul.mubr.bf16.gmra.mrb[0].mxu0 %v105
    %v148 = vpop.f32.mrb[0].mxu0
    %v149 = vadd.f32 0.0, %v148
    %v150 = vpop.f32.mrb[0].mxu0
    %v151 = vpop.f32.mrb[0].mxu0
    %v152 = vadd.f32 0.0, %v151
    %v153 = vpop.f32.mrb[0].mxu0
    %154 = vmatprep.mubr.bf16.mxu0 0
    %155 = vmatmul.mubr.bf16.gmra.mrb[0].mxu0 %v108
    %v156 = vpop.f32.mrb[0].mxu0
    %v157 = vadd.f32 0.0, %v156
    %v158 = vpop.f32.mrb[0].mxu0
    %v159 = vpop.f32.mrb[0].mxu0
    %v160 = vadd.f32 0.0, %v159
    %v161 = vpop.f32.mrb[0].mxu0
    %162 = vdwg.mxu0
    %v164 = vsel %vm103, %v77, 0
    %v167 = vsel %vm103, %v78, 0
    %v170 = vsel %vm110, %v79, 0
    %172 = vmatprep.subr.bf16.mxu0 0
    %173 = vmatpush1.bf16.msra.mxu0 %v170
    %174 = vmatprep.subr.bf16.mxu0 0
    %175 = vmatpush1.bf16.msra.mxu0 0
    %176 = vmatprep.subr.bf16.mxu0 0
    %177 = vmatpush1.bf16.msra.mxu0 0
    %178 = vmatprep.subr.bf16.mxu0 0
    %179 = vmatpush1.bf16.msra.mxu0 0
    %180 = vmatprep.subr.bf16.mxu0 0
    %181 = vmatpush1.bf16.msra.mxu0 0
    %182 = vmatprep.subr.bf16.mxu0 0
    %183 = vmatpush1.bf16.msra.mxu0 0
    %184 = vmatprep.subr.bf16.mxu0 0
    %185 = vmatpush1.bf16.msra.mxu0 0
    %186 = vmatprep.subr.bf16.mxu0 0
    %187 = vmatpush1.bf16.msra.mxu0 0
    %188 = vmatprep.subr.bf16.mxu0 0
    %189 = vmatpush1.bf16.msra.mxu0 0
    %190 = vmatprep.subr.bf16.mxu0 0
    %191 = vmatpush1.bf16.msra.mxu0 0
    %192 = vmatprep.subr.bf16.mxu0 0
    %193 = vmatpush1.bf16.msra.mxu0 0
    %194 = vmatprep.subr.bf16.mxu0 0
    %195 = vmatpush1.bf16.msra.mxu0 0
    %196 = vmatprep.subr.bf16.mxu0 0
    %197 = vmatpush1.bf16.msra.mxu0 0
    %198 = vmatprep.subr.bf16.mxu0 0
    %199 = vmatpush1.bf16.msra.mxu0 0
    %200 = vmatprep.subr.bf16.mxu0 0
    %201 = vmatpush1.bf16.msra.mxu0 0
    %202 = vmatprep.subr.bf16.mxu0 0
    %203 = vmatpush1.bf16.msra.mxu0 0
    %204 = vmatprep.mubr.bf16.mxu0 0
    %205 = vmatmul.mubr.bf16.gmra.mrb[0].mxu0 %v164
    %v206 = vpop.f32.mrb[0].mxu0
    %v207 = vadd.f32 %v149, %v206
    %v208 = vpop.f32.mrb[0].mxu0
    %v209 = vpop.f32.mrb[0].mxu0
    %v210 = vadd.f32 %v152, %v209
    %v211 = vpop.f32.mrb[0].mxu0
    %212 = vmatprep.mubr.bf16.mxu0 0
    %213 = vmatmul.mubr.bf16.gmra.mrb[0].mxu0 %v167
    %v214 = vpop.f32.mrb[0].mxu0
    %v215 = vadd.f32 %v157, %v214
    %v216 = vpop.f32.mrb[0].mxu0
    %v217 = vpop.f32.mrb[0].mxu0
    %v218 = vadd.f32 %v160, %v217
    %v219 = vpop.f32.mrb[0].mxu0
    %220 = vdwg.mxu0
    %vm221 = vcmask 1045504
    %v222 = vrot.slane %v73, 2
    %v223 = vrot.slane %v63, 2
    %v224 = vsel %vm221, %v222, %v223
    %v225 = vrot.slane %v75, 2
    %v226 = vsel %vm221, %v223, %v225
    %v227 = vrot.slane %v74, 2
    %v228 = vrot.slane %v66, 2
    %v229 = vsel %vm221, %v227, %v228
    %v230 = vrot.slane %v76, 2
    %v231 = vsel %vm221, %v228, %v230
    %v236 = vpack.c.bf16 %v226, %v224
    %v237 = vpack.c.bf16 %v231, %v229
    %s238 = scalar_lea.vmem %s3, 8
    %v239 = vld [vmem:[%s238] sm:$0xf]
    %v241 = vsel %vm103, %v236, 0
    %v244 = vsel %vm103, %v237, 0
    %v247 = vsel %vm110, %v239, 0
    %249 = vmatprep.subr.bf16.mxu0 0
    %250 = vmatpush1.bf16.msra.mxu0 %v247
    %251 = vmatprep.subr.bf16.mxu0 0
    %252 = vmatpush1.bf16.msra.mxu0 0
    %253 = vmatprep.subr.bf16.mxu0 0
    %254 = vmatpush1.bf16.msra.mxu0 0
    %255 = vmatprep.subr.bf16.mxu0 0
    %256 = vmatpush1.bf16.msra.mxu0 0
    %257 = vmatprep.subr.bf16.mxu0 0
    %258 = vmatpush1.bf16.msra.mxu0 0
    %259 = vmatprep.subr.bf16.mxu0 0
    %260 = vmatpush1.bf16.msra.mxu0 0
    %261 = vmatprep.subr.bf16.mxu0 0
    %262 = vmatpush1.bf16.msra.mxu0 0
    %263 = vmatprep.subr.bf16.mxu0 0
    %264 = vmatpush1.bf16.msra.mxu0 0
    %265 = vmatprep.subr.bf16.mxu0 0
    %266 = vmatpush1.bf16.msra.mxu0 0
    %267 = vmatprep.subr.bf16.mxu0 0
    %268 = vmatpush1.bf16.msra.mxu0 0
    %269 = vmatprep.subr.bf16.mxu0 0
    %270 = vmatpush1.bf16.msra.mxu0 0
    %271 = vmatprep.subr.bf16.mxu0 0
    %272 = vmatpush1.bf16.msra.mxu0 0
    %273 = vmatprep.subr.bf16.mxu0 0
    %274 = vmatpush1.bf16.msra.mxu0 0
    %275 = vmatprep.subr.bf16.mxu0 0
    %276 = vmatpush1.bf16.msra.mxu0 0
    %277 = vmatprep.subr.bf16.mxu0 0
    %278 = vmatpush1.bf16.msra.mxu0 0
    %279 = vmatprep.subr.bf16.mxu0 0
    %280 = vmatpush1.bf16.msra.mxu0 0
    %281 = vmatprep.mubr.bf16.mxu0 0
    %282 = vmatmul.mubr.bf16.gmra.mrb[0].mxu0 %v241
    %v283 = vpop.f32.mrb[0].mxu0
    %v284 = vadd.f32 0.0, %v283
    %v285 = vpop.f32.mrb[0].mxu0
    %v286 = vpop.f32.mrb[0].mxu0
    %v287 = vadd.f32 0.0, %v286
    %v288 = vpop.f32.mrb[0].mxu0
    %289 = vmatprep.mubr.bf16.mxu0 0
    %290 = vmatmul.mubr.bf16.gmra.mrb[0].mxu0 %v244
    %v291 = vpop.f32.mrb[0].mxu0
    %v292 = vadd.f32 0.0, %v291
    %v293 = vpop.f32.mrb[0].mxu0
    %v294 = vpop.f32.mrb[0].mxu0
    %v295 = vadd.f32 0.0, %v294
    %v296 = vpop.f32.mrb[0].mxu0
    %297 = vdwg.mxu0
    %v298 = vadd.f32 %v207, %v284
    %v299 = vadd.f32 %v210, %v287
    %v300 = vadd.f32 %v215, %v292
    %v301 = vadd.f32 %v218, %v295
    %v302 = vlaneseq
    %v303 = vshrl.u32 %v302, 7
    %v304 = vsub.s32 0, %v303
    %v305 = vrot.slane %v26, %v304
    %v306 = vadd.f32 %v298, %v305
    %v307 = vadd.f32 %v299, %v305
    %v308 = vadd.f32 %v300, %v305
    %v309 = vadd.f32 %v301, %v305
    %v310 = vmax.f32 %v306, 0.0
    %v311 = vmax.f32 %v307, 0.0
    %v312 = vmax.f32 %v308, 0.0
    %v313 = vmax.f32 %v309, 0.0
    %vm314 = vcmask 261120
    %v315 = vsel %vm314, %v310, 0.0
    %316 = vadd.xlane.f32.xlu0 %v315
    %v317 = vpop.xlane.xlu0 %316
    %v318 = vsel %vm314, %v311, 0.0
    %319 = vadd.xlane.f32.xlu0 %v318
    %v320 = vpop.xlane.xlu0 %319
    %v321 = vsel %vm314, %v312, 0.0
    %322 = vadd.xlane.f32.xlu0 %v321
    %v323 = vpop.xlane.xlu0 %322
    %v324 = vsel %vm314, %v313, 0.0
    %325 = vadd.xlane.f32.xlu0 %v324
    %v326 = vpop.xlane.xlu0 %325
    %v327 = vrcp.pop 32.0
    %v328 = vmul.f32 %v317, %v327
    %v329 = vmul.f32 %v320, %v327
    %v330 = vmul.f32 %v323, %v327
    %v331 = vmul.f32 %v326, %v327
    %v332 = vsub.f32 %v310, %v328
    %v333 = vsub.f32 %v311, %v329
    %v334 = vsub.f32 %v312, %v330
    %v335 = vsub.f32 %v313, %v331
    %v336 = vmul.f32 %v332, %v332
    %v337 = vmul.f32 %v333, %v333
    %v338 = vmul.f32 %v334, %v334
    %v339 = vmul.f32 %v335, %v335
    %v340 = vsel %vm314, %v336, 0.0
    %341 = vadd.xlane.f32.xlu0 %v340
    %v342 = vpop.xlane.xlu0 %341
    %v343 = vsel %vm314, %v337, 0.0
    %344 = vadd.xlane.f32.xlu0 %v343
    %v345 = vpop.xlane.xlu0 %344
    %v346 = vsel %vm314, %v338, 0.0
    %347 = vadd.xlane.f32.xlu0 %v346
    %v348 = vpop.xlane.xlu0 %347
    %v349 = vsel %vm314, %v339, 0.0
    %350 = vadd.xlane.f32.xlu0 %v349
    %v351 = vpop.xlane.xlu0 %350
    %v352 = vmul.f32 %v342, %v327
    %v353 = vmul.f32 %v345, %v327
    %v354 = vmul.f32 %v348, %v327
    %v355 = vmul.f32 %v351, %v327
    %v356 = vadd.f32 %v352, 1e-05
    %v357 = vadd.f32 %v353, 1e-05
    %v358 = vadd.f32 %v354, 1e-05
    %v359 = vadd.f32 %v355, 1e-05
    %v360 = vrsqrt.pop %v356
    %v361 = vrsqrt.pop %v357
    %v362 = vrsqrt.pop %v358
    %v363 = vrsqrt.pop %v359
    %v364 = vmul.f32 %v332, %v360
    %v365 = vmul.f32 %v333, %v361
    %v366 = vmul.f32 %v334, %v362
    %v367 = vmul.f32 %v335, %v363
    %v368 = vlaneseq
    %v369 = vshrl.u32 %v368, 7
    %v370 = vsub.s32 1, %v369
    %v371 = vrot.slane %v26, %v370
    %v372 = vmul.f32 %v364, %v371
    %v373 = vmul.f32 %v365, %v371
    %v374 = vmul.f32 %v366, %v371
    %v375 = vmul.f32 %v367, %v371
    %v376 = vlaneseq
    %v377 = vshrl.u32 %v376, 7
    %v378 = vsub.s32 2, %v377
    %v379 = vrot.slane %v26, %v378
    %v380 = vadd.f32 %v372, %v379
    %v381 = vadd.f32 %v373, %v379
    %v382 = vadd.f32 %v374, %v379
    %v383 = vadd.f32 %v375, %v379
    %v384 = vmul.f32 %v380, %v35
    %v385 = vmul.f32 %v381, %v40
    %v386 = vmul.f32 %v382, %v45
    %v387 = vmul.f32 %v383, %v50
    %v392 = vrot.slane %v384, 7
    %v393 = vrot.slane %v385, 7
    %v394 = vsel %vm60, %v392, %v393
    %v395 = vrot.slane %v386, 7
    %v396 = vrot.slane %v387, 7
    %v397 = vsel %vm60, %v395, %v396
    %v404 = vsel %vm60, 0.0, %v392
    %v405 = vsel %vm60, 0.0, %v395
    %v406 = vsel %vm60, %v393, 0.0
    %v407 = vsel %vm60, %v396, 0.0
    %v408 = vpack.c.bf16 %v394, %v404
    %v409 = vpack.c.bf16 %v397, %v405
    %v410 = vld [vmem:[%s4] sm:$0xf]
    %v411 = vld [vmem:[%s4 + $0x4] sm:$0xf]
    %v412 = vld [vmem:[%s4 + $0x8] sm:$0xf]
    %v413 = vld [vmem:[%s4 + $0xc] sm:$0xf]
    %v418 = vrot.slane %v404, 1
    %v419 = vrot.slane %v394, 1
    %v420 = vsel %vm84, %v418, %v419
    %v421 = vrot.slane %v406, 1
    %v422 = vsel %vm84, %v419, %v421
    %v423 = vrot.slane %v405, 1
    %v424 = vrot.slane %v397, 1
    %v425 = vsel %vm84, %v423, %v424
    %v426 = vrot.slane %v407, 1
    %v427 = vsel %vm84, %v424, %v426
    %v432 = vpack.c.bf16 %v422, %v420
    %v433 = vpack.c.bf16 %v427, %v425
    %s434 = scalar_lea.vmem %s4, 16
    %v435 = vld [vmem:[%s434] sm:$0xf]
    %v436 = vld [vmem:[%s434 + $0x4] sm:$0xf]
    %v437 = vld [vmem:[%s434 + $0x8] sm:$0xf]
    %v438 = vld [vmem:[%s434 + $0xc] sm:$0xf]
    %v443 = vunpack.c.l.b16 %v435
    %v444 = vunpack.c.l.b16 %v436
    %v445 = vunpack.c.l.b16 %v437
    %v446 = vunpack.c.l.b16 %v438
    %v447 = vpack.c.b16 %v444, %v443
    %v448 = vpack.c.b16 %v446, %v445
    %v452 = vsel %vm314, %v432, 0
    %v455 = vsel %vm314, %v433, 0
    %457 = vmatprep.subr.bf16.mxu0 0
    %458 = vmatpush1.bf16.msra.mxu0 %v447
    %459 = vmatprep.subr.bf16.mxu0 0
    %460 = vmatpush1.bf16.msra.mxu0 %v448
    %461 = vmatprep.subr.bf16.mxu0 0
    %462 = vmatpush1.bf16.msra.mxu0 0
    %463 = vmatprep.subr.bf16.mxu0 0
    %464 = vmatpush1.bf16.msra.mxu0 0
    %465 = vmatprep.subr.bf16.mxu0 0
    %466 = vmatpush1.bf16.msra.mxu0 0
    %467 = vmatprep.subr.bf16.mxu0 0
    %468 = vmatpush1.bf16.msra.mxu0 0
    %469 = vmatprep.subr.bf16.mxu0 0
    %470 = vmatpush1.bf16.msra.mxu0 0
    %471 = vmatprep.subr.bf16.mxu0 0
    %472 = vmatpush1.bf16.msra.mxu0 0
    %473 = vmatprep.subr.bf16.mxu0 0
    %474 = vmatpush1.bf16.msra.mxu0 0
    %475 = vmatprep.subr.bf16.mxu0 0
    %476 = vmatpush1.bf16.msra.mxu0 0
    %477 = vmatprep.subr.bf16.mxu0 0
    %478 = vmatpush1.bf16.msra.mxu0 0
    %479 = vmatprep.subr.bf16.mxu0 0
    %480 = vmatpush1.bf16.msra.mxu0 0
    %481 = vmatprep.subr.bf16.mxu0 0
    %482 = vmatpush1.bf16.msra.mxu0 0
    %483 = vmatprep.subr.bf16.mxu0 0
    %484 = vmatpush1.bf16.msra.mxu0 0
    %485 = vmatprep.subr.bf16.mxu0 0
    %486 = vmatpush1.bf16.msra.mxu0 0
    %487 = vmatprep.subr.bf16.mxu0 0
    %488 = vmatpush1.bf16.msra.mxu0 0
    %489 = vmatprep.mubr.bf16.mxu0 0
    %490 = vmatmul.mubr.bf16.gmra.mrb[0].mxu0 %v452
    %v491 = vpop.f32.mrb[0].mxu0
    %v492 = vadd.f32 0.0, %v491
    %v493 = vpop.f32.mrb[0].mxu0
    %v494 = vpop.f32.mrb[0].mxu0
    %v495 = vadd.f32 0.0, %v494
    %v496 = vpop.f32.mrb[0].mxu0
    %497 = vmatprep.mubr.bf16.mxu0 0
    %498 = vmatmul.mubr.bf16.gmra.mrb[0].mxu0 %v455
    %v499 = vpop.f32.mrb[0].mxu0
    %v500 = vadd.f32 0.0, %v499
    %v501 = vpop.f32.mrb[0].mxu0
    %v502 = vpop.f32.mrb[0].mxu0
    %v503 = vadd.f32 0.0, %v502
    %v504 = vpop.f32.mrb[0].mxu0
    %505 = vdwg.mxu0
    %v510 = vunpack.c.l.b16 %v410
    %v511 = vunpack.c.l.b16 %v411
    %v512 = vunpack.c.l.b16 %v412
    %v513 = vunpack.c.l.b16 %v413
    %v514 = vpack.c.b16 %v511, %v510
    %v515 = vpack.c.b16 %v513, %v512
    %v519 = vsel %vm314, %v408, 0
    %v522 = vsel %vm314, %v409, 0
    %524 = vmatprep.subr.bf16.mxu0 0
    %525 = vmatpush1.bf16.msra.mxu0 %v514
    %526 = vmatprep.subr.bf16.mxu0 0
    %527 = vmatpush1.bf16.msra.mxu0 %v515
    %528 = vmatprep.subr.bf16.mxu0 0
    %529 = vmatpush1.bf16.msra.mxu0 0
    %530 = vmatprep.subr.bf16.mxu0 0
    %531 = vmatpush1.bf16.msra.mxu0 0
    %532 = vmatprep.subr.bf16.mxu0 0
    %533 = vmatpush1.bf16.msra.mxu0 0
    %534 = vmatprep.subr.bf16.mxu0 0
    %535 = vmatpush1.bf16.msra.mxu0 0
    %536 = vmatprep.subr.bf16.mxu0 0
    %537 = vmatpush1.bf16.msra.mxu0 0
    %538 = vmatprep.subr.bf16.mxu0 0
    %539 = vmatpush1.bf16.msra.mxu0 0
    %540 = vmatprep.subr.bf16.mxu0 0
    %541 = vmatpush1.bf16.msra.mxu0 0
    %542 = vmatprep.subr.bf16.mxu0 0
    %543 = vmatpush1.bf16.msra.mxu0 0
    %544 = vmatprep.subr.bf16.mxu0 0
    %545 = vmatpush1.bf16.msra.mxu0 0
    %546 = vmatprep.subr.bf16.mxu0 0
    %547 = vmatpush1.bf16.msra.mxu0 0
    %548 = vmatprep.subr.bf16.mxu0 0
    %549 = vmatpush1.bf16.msra.mxu0 0
    %550 = vmatprep.subr.bf16.mxu0 0
    %551 = vmatpush1.bf16.msra.mxu0 0
    %552 = vmatprep.subr.bf16.mxu0 0
    %553 = vmatpush1.bf16.msra.mxu0 0
    %554 = vmatprep.subr.bf16.mxu0 0
    %555 = vmatpush1.bf16.msra.mxu0 0
    %556 = vmatprep.mubr.bf16.mxu0 0
    %557 = vmatmul.mubr.bf16.gmra.mrb[0].mxu0 %v519
    %v558 = vpop.f32.mrb[0].mxu0
    %v559 = vadd.f32 %v492, %v558
    %v560 = vpop.f32.mrb[0].mxu0
    %v561 = vpop.f32.mrb[0].mxu0
    %v562 = vadd.f32 %v495, %v561
    %v563 = vpop.f32.mrb[0].mxu0
    %564 = vmatprep.mubr.bf16.mxu0 0
    %565 = vmatmul.mubr.bf16.gmra.mrb[0].mxu0 %v522
    %v566 = vpop.f32.mrb[0].mxu0
    %v567 = vadd.f32 %v500, %v566
    %v568 = vpop.f32.mrb[0].mxu0
    %v569 = vpop.f32.mrb[0].mxu0
    %v570 = vadd.f32 %v503, %v569
    %v571 = vpop.f32.mrb[0].mxu0
    %572 = vdwg.mxu0
    %v573 = vrot.slane %v404, 2
    %v574 = vrot.slane %v394, 2
    %v575 = vsel %vm221, %v573, %v574
    %v576 = vrot.slane %v406, 2
    %v577 = vsel %vm221, %v574, %v576
    %v578 = vrot.slane %v405, 2
    %v579 = vrot.slane %v397, 2
    %v580 = vsel %vm221, %v578, %v579
    %v581 = vrot.slane %v407, 2
    %v582 = vsel %vm221, %v579, %v581
    %v587 = vpack.c.bf16 %v577, %v575
    %v588 = vpack.c.bf16 %v582, %v580
    %s589 = scalar_lea.vmem %s4, 32
    %v590 = vld [vmem:[%s589] sm:$0xf]
    %v591 = vld [vmem:[%s589 + $0x4] sm:$0xf]
    %v592 = vld [vmem:[%s589 + $0x8] sm:$0xf]
    %v593 = vld [vmem:[%s589 + $0xc] sm:$0xf]
    %v598 = vunpack.c.l.b16 %v590
    %v599 = vunpack.c.l.b16 %v591
    %v600 = vunpack.c.l.b16 %v592
    %v601 = vunpack.c.l.b16 %v593
    %v602 = vpack.c.b16 %v599, %v598
    %v603 = vpack.c.b16 %v601, %v600
    %v607 = vsel %vm314, %v587, 0
    %v610 = vsel %vm314, %v588, 0
    %612 = vmatprep.subr.bf16.mxu0 0
    %613 = vmatpush1.bf16.msra.mxu0 %v602
    %614 = vmatprep.subr.bf16.mxu0 0
    %615 = vmatpush1.bf16.msra.mxu0 %v603
    %616 = vmatprep.subr.bf16.mxu0 0
    %617 = vmatpush1.bf16.msra.mxu0 0
    %618 = vmatprep.subr.bf16.mxu0 0
    %619 = vmatpush1.bf16.msra.mxu0 0
    %620 = vmatprep.subr.bf16.mxu0 0
    %621 = vmatpush1.bf16.msra.mxu0 0
    %622 = vmatprep.subr.bf16.mxu0 0
    %623 = vmatpush1.bf16.msra.mxu0 0
    %624 = vmatprep.subr.bf16.mxu0 0
    %625 = vmatpush1.bf16.msra.mxu0 0
    %626 = vmatprep.subr.bf16.mxu0 0
    %627 = vmatpush1.bf16.msra.mxu0 0
    %628 = vmatprep.subr.bf16.mxu0 0
    %629 = vmatpush1.bf16.msra.mxu0 0
    %630 = vmatprep.subr.bf16.mxu0 0
    %631 = vmatpush1.bf16.msra.mxu0 0
    %632 = vmatprep.subr.bf16.mxu0 0
    %633 = vmatpush1.bf16.msra.mxu0 0
    %634 = vmatprep.subr.bf16.mxu0 0
    %635 = vmatpush1.bf16.msra.mxu0 0
    %636 = vmatprep.subr.bf16.mxu0 0
    %637 = vmatpush1.bf16.msra.mxu0 0
    %638 = vmatprep.subr.bf16.mxu0 0
    %639 = vmatpush1.bf16.msra.mxu0 0
    %640 = vmatprep.subr.bf16.mxu0 0
    %641 = vmatpush1.bf16.msra.mxu0 0
    %642 = vmatprep.subr.bf16.mxu0 0
    %643 = vmatpush1.bf16.msra.mxu0 0
    %644 = vmatprep.mubr.bf16.mxu0 0
    %645 = vmatmul.mubr.bf16.gmra.mrb[0].mxu0 %v607
    %v646 = vpop.f32.mrb[0].mxu0
    %v647 = vadd.f32 0.0, %v646
    %v648 = vpop.f32.mrb[0].mxu0
    %v649 = vpop.f32.mrb[0].mxu0
    %v650 = vadd.f32 0.0, %v649
    %v651 = vpop.f32.mrb[0].mxu0
    %652 = vmatprep.mubr.bf16.mxu0 0
    %653 = vmatmul.mubr.bf16.gmra.mrb[0].mxu0 %v610
    %v654 = vpop.f32.mrb[0].mxu0
    %v655 = vadd.f32 0.0, %v654
    %v656 = vpop.f32.mrb[0].mxu0
    %v657 = vpop.f32.mrb[0].mxu0
    %v658 = vadd.f32 0.0, %v657
    %v659 = vpop.f32.mrb[0].mxu0
    %660 = vdwg.mxu0
    %v661 = vadd.f32 %v559, %v647
    %v662 = vadd.f32 %v562, %v650
    %v663 = vadd.f32 %v567, %v655
    %v664 = vadd.f32 %v570, %v658
    %v665 = vlaneseq
    %v666 = vshrl.u32 %v665, 7
    %v667 = vsub.s32 3, %v666
    %v668 = vrot.slane %v26, %v667
    %v669 = vadd.f32 %v661, %v668
    %v670 = vadd.f32 %v662, %v668
    %v671 = vadd.f32 %v663, %v668
    %v672 = vadd.f32 %v664, %v668
    %v673 = vmax.f32 %v669, 0.0
    %v674 = vmax.f32 %v670, 0.0
    %v675 = vmax.f32 %v671, 0.0
    %v676 = vmax.f32 %v672, 0.0
    %v677 = vsel %vm314, %v673, 0.0
    %678 = vadd.xlane.f32.xlu0 %v677
    %v679 = vpop.xlane.xlu0 %678
    %v680 = vsel %vm314, %v674, 0.0
    %681 = vadd.xlane.f32.xlu0 %v680
    %v682 = vpop.xlane.xlu0 %681
    %v683 = vsel %vm314, %v675, 0.0
    %684 = vadd.xlane.f32.xlu0 %v683
    %v685 = vpop.xlane.xlu0 %684
    %v686 = vsel %vm314, %v676, 0.0
    %687 = vadd.xlane.f32.xlu0 %v686
    %v688 = vpop.xlane.xlu0 %687
    %v689 = vmul.f32 %v679, %v327
    %v690 = vmul.f32 %v682, %v327
    %v691 = vmul.f32 %v685, %v327
    %v692 = vmul.f32 %v688, %v327
    %v693 = vsub.f32 %v673, %v689
    %v694 = vsub.f32 %v674, %v690
    %v695 = vsub.f32 %v675, %v691
    %v696 = vsub.f32 %v676, %v692
    %v697 = vmul.f32 %v693, %v693
    %v698 = vmul.f32 %v694, %v694
    %v699 = vmul.f32 %v695, %v695
    %v700 = vmul.f32 %v696, %v696
    %v701 = vsel %vm314, %v697, 0.0
    %702 = vadd.xlane.f32.xlu0 %v701
    %v703 = vpop.xlane.xlu0 %702
    %v704 = vsel %vm314, %v698, 0.0
    %705 = vadd.xlane.f32.xlu0 %v704
    %v706 = vpop.xlane.xlu0 %705
    %v707 = vsel %vm314, %v699, 0.0
    %708 = vadd.xlane.f32.xlu0 %v707
    %v709 = vpop.xlane.xlu0 %708
    %v710 = vsel %vm314, %v700, 0.0
    %711 = vadd.xlane.f32.xlu0 %v710
    %v712 = vpop.xlane.xlu0 %711
    %v713 = vmul.f32 %v703, %v327
    %v714 = vmul.f32 %v706, %v327
    %v715 = vmul.f32 %v709, %v327
    %v716 = vmul.f32 %v712, %v327
    %v717 = vadd.f32 %v713, 1e-05
    %v718 = vadd.f32 %v714, 1e-05
    %v719 = vadd.f32 %v715, 1e-05
    %v720 = vadd.f32 %v716, 1e-05
    %v721 = vrsqrt.pop %v717
    %v722 = vrsqrt.pop %v718
    %v723 = vrsqrt.pop %v719
    %v724 = vrsqrt.pop %v720
    %v725 = vmul.f32 %v693, %v721
    %v726 = vmul.f32 %v694, %v722
    %v727 = vmul.f32 %v695, %v723
    %v728 = vmul.f32 %v696, %v724
    %v729 = vlaneseq
    %v730 = vshrl.u32 %v729, 7
    %v731 = vsub.s32 4, %v730
    %v732 = vrot.slane %v26, %v731
    %v733 = vmul.f32 %v725, %v732
    %v734 = vmul.f32 %v726, %v732
    %v735 = vmul.f32 %v727, %v732
    %v736 = vmul.f32 %v728, %v732
    %v737 = vlaneseq
    %v738 = vshrl.u32 %v737, 7
    %v739 = vsub.s32 5, %v738
    %v740 = vrot.slane %v26, %v739
    %v741 = vadd.f32 %v733, %v740
    %v742 = vadd.f32 %v734, %v740
    %v743 = vadd.f32 %v735, %v740
    %v744 = vadd.f32 %v736, %v740
    %v745 = vmul.f32 %v741, %v35
    %v746 = vmul.f32 %v742, %v40
    %v747 = vmul.f32 %v743, %v45
    %v748 = vmul.f32 %v744, %v50
    %v749 = vlaneseq
    %v750 = vshrl.u32 %v749, 7
    %v751 = vsub.s32 6, %v750
    %v752 = vrot.slane %v26, %v751
    %v753 = vmul.f32 %v745, %v752
    %v754 = vmul.f32 %v746, %v752
    %v755 = vmul.f32 %v747, %v752
    %v756 = vmul.f32 %v748, %v752
    %v757 = vlaneseq
    %v758 = vshrl.u32 %v757, 7
    %v759 = vsub.s32 7, %v758
    %v760 = vrot.slane %v27, %v759
    %v761 = vadd.f32 %v753, %v760
    %v762 = vadd.f32 %v754, %v760
    %v763 = vadd.f32 %v755, %v760
    %v764 = vadd.f32 %v756, %v760
    %v765 = vmul.f32 %v35, %v761
    %v766 = vmul.f32 %v40, %v762
    %v767 = vmul.f32 %v45, %v763
    %v768 = vmul.f32 %v50, %v764
    %v769 = vsel %vm314, %v765, 0.0
    %770 = vadd.xlane.f32.xlu0 %v769
    %v771 = vpop.xlane.xlu0 %770
    %v772 = vsel %vm314, %v766, 0.0
    %773 = vadd.xlane.f32.xlu0 %v772
    %v774 = vpop.xlane.xlu0 %773
    %v775 = vsel %vm314, %v767, 0.0
    %776 = vadd.xlane.f32.xlu0 %v775
    %v777 = vpop.xlane.xlu0 %776
    %v778 = vsel %vm314, %v768, 0.0
    %779 = vadd.xlane.f32.xlu0 %v778
    %v780 = vpop.xlane.xlu0 %779
    %v785 = vlaneseq
    %v786 = vand.u32 %v785, 127
    %v787 = vlaneseq
    %v788 = vshrl.u32 %v787, 7
    %v789 = vsub.s32 %v786, %v788
    %v790 = vrot.slane %v771, %v789
    %v791 = vadd.s32 %v786, 4294967288
    %v792 = vlaneseq
    %v793 = vshrl.u32 %v792, 7
    %v794 = vsub.s32 %v791, %v793
    %v795 = vrot.slane %v774, %v794
    %vm796 = vcmask 130112
    %v797 = vsel %vm796, %v795, %v790
    %v798 = vlaneseq
    %v799 = vshrl.u32 %v798, 7
    %v800 = vsub.s32 %v786, %v799
    %v801 = vrot.slane %v777, %v800
    %v802 = vlaneseq
    %v803 = vshrl.u32 %v802, 7
    %v804 = vsub.s32 %v791, %v803
    %v805 = vrot.slane %v780, %v804
    %v806 = vsel %vm796, %v805, %v801
    %vm807 = vcmask 1041409
    %v808 = vsel %vm807, %v806, %v797
    %vm810 = vcmask 123904
    %811 = vst.msk [vmem:[#allocation2] sm:$0x3] %vm810, %v808
    // Predicated region
    $region22: #{tpu_custom_call.1} parent=1 // pred_check
      _
    $region23: #{tpu_custom_call.1} parent=1 // pred_check_branch
      %813 = sbr.rel (0) target = $region25
    $region24: #{tpu_custom_call.1} parent=1 // pred_region
      %s815 = ssub.s32 32, 32
      %816 = vsyncadd [#allocation3], %s815
      %s818 = sshll.u32 [#allocation2], 4
      %s819 = int_to_ptr.vmem [resolvable:$true] %s818
      %821 = dma.vmem_to_hbm [thread:$0]  %s819, 32, %s5, [#allocation3]
    $region25: #{tpu_custom_call.1} parent=1 // pred_fallthru
      _
    // Predicated region
    $region26: #{tpu_custom_call.1} parent=1 // pred_check
      _
    $region27: #{tpu_custom_call.1} parent=1 // pred_check_branch
      %823 = sbr.rel (0) target = $region29
    $region28: #{tpu_custom_call.1} parent=1 // pred_region
      %824 = dma.done [#allocation3], 32
    $region29: #{tpu_custom_call.1} parent=1 // pred_fallthru
      _
    %825 = vsyncpa [#allocation3], 1

</llo_original>
